<compile_context>
chip_gen: v5e
topology: v5e:2x2
jax: 0.10.0
libtpu: 0.0.40
codegen_flags: <defaults>
</compile_context>

<pallas_src>
import numpy as np
import jax
import jax.numpy as jnp
from jax.experimental import pallas as pl
from jax.experimental.pallas import tpu as pltpu


def _round_up(x, m):
    return ((x + m - 1) // m) * m


def _fgconv_matmul_kernel(p_ref, w_ref, b_ref, o_ref):
    # p_ref: (tm, K)  bf16 im2col patch tile
    # w_ref: (K, to)  bf16 pre-masked, pre-transposed weight tile
    # b_ref: (1, to)  f32 bias tile
    # o_ref: (tm, to) output tile
    acc = jnp.dot(p_ref[...], w_ref[...], preferred_element_type=jnp.float32)
    o_ref[...] = (acc + b_ref[...]).astype(o_ref.dtype)


def fgconv2d_pallas(x, weight, bias, U, *, stride, padding, dilation,
                    tm_max=512, compute_dtype=jnp.bfloat16):
    N, C, H, W = x.shape
    O, _, KH, KW = weight.shape
    sh, sw = stride
    ph, pw = padding
    dh, dw = dilation

    Hout = (H + 2 * ph - dh * (KH - 1) - 1) // sh + 1
    Wout = (W + 2 * pw - dw * (KW - 1) - 1) // sw + 1
    K = C * KH * KW
    M = N * Hout * Wout

    # ---- glue: pad + im2col (K ordered as (C, KH, KW) to match OIHW flatten) ----
    # TODO(synk): im2col is still materialized in HBM (KH*KW x blowup); building
    # the shifted views in-kernel from an NHWC VMEM slab would remove that traffic.
    x_pad = jnp.pad(x, ((0, 0), (0, 0), (ph, ph), (pw, pw)))
    cols = []
    for kh in range(KH):
        for kw in range(KW):
            sl = x_pad[:, :,
                       kh * dh: kh * dh + sh * (Hout - 1) + 1: sh,
                       kw * dw: kw * dw + sw * (Wout - 1) + 1: sw]
            cols.append(sl)                           # (N, C, Hout, Wout)
    patches = jnp.stack(cols, axis=2)                 # (N, C, KH*KW, Hout, Wout)
    patches = patches.reshape(N, K, Hout * Wout)
    patches = jnp.transpose(patches, (0, 2, 1)).reshape(M, K)

    # ---- tiling choices --------------------------------------------------------
    elt = jnp.dtype(compute_dtype).itemsize
    tm = min(tm_max, max(128, _round_up(M, 128)))
    # keep patch double-buffers comfortably inside scoped VMEM when K is large
    max_tm_vmem = max(128, ((8 * 1024 * 1024) // (2 * elt * K)) // 128 * 128)
    tm = max(128, min(tm, max_tm_vmem))
    Mpad = _round_up(M, tm)

    Opad = _round_up(O, 128)
    to = 256 if Opad % 256 == 0 else 128

    # ---- fold mask into weight once; pre-transpose to (K, Opad); bf16 cast ----
    u_flat = jnp.broadcast_to(U.reshape(O, C, 1, 1), (O, C, KH, KW)).reshape(O, K)
    w2d = weight.reshape(O, K) * u_flat                       # masked weight (O, K)
    wko = jnp.transpose(w2d, (1, 0))                          # (K, O)
    if Opad != O:
        wko = jnp.pad(wko, ((0, 0), (0, Opad - O)))
    wko = wko.astype(compute_dtype)

    b2d = bias.astype(jnp.float32)
    if Opad != O:
        b2d = jnp.pad(b2d, (0, Opad - O))
    b2d = b2d.reshape(1, Opad)

    if Mpad != M:
        patches = jnp.pad(patches, ((0, Mpad - M), (0, 0)))
    patches = patches.astype(compute_dtype)

    out_itemsize = jnp.dtype(x.dtype).itemsize
    vmem_est = (2 * tm * K * elt          # patch tile double-buffer
                + 2 * K * to * elt        # weight tile double-buffer
                + 2 * to * 4              # bias tile
                + 2 * tm * to * out_itemsize)  # output tile double-buffer
    vmem_limit = int(min(64 * 1024 * 1024, max(32 * 1024 * 1024, 2 * vmem_est)))

    # ---- Pallas: (tm, K) x (K, to) matmul + bias, tiled over M and O ----------
    # TODO(synk): add a trailing "arbitrary" K-reduction grid axis with an f32
    # VMEM accumulator (init/finalize via pl.when) for very large C*KH*KW.
    out = pl.pallas_call(
        _fgconv_matmul_kernel,
        out_shape=jax.ShapeDtypeStruct((Mpad, Opad), x.dtype),
        grid_spec=pltpu.PrefetchScalarGridSpec(
            num_scalar_prefetch=0,
            grid=(Mpad // tm, Opad // to),
            in_specs=[
                pl.BlockSpec((tm, K), lambda mi, oi: (mi, 0)),   # patches tile
                pl.BlockSpec((K, to), lambda mi, oi: (0, oi)),   # masked weight tile
                pl.BlockSpec((1, to), lambda mi, oi: (0, oi)),   # bias tile
            ],
            out_specs=pl.BlockSpec((tm, to), lambda mi, oi: (mi, oi)),
        ),
        compiler_params=pltpu.CompilerParams(
            dimension_semantics=("parallel", "parallel"),
            vmem_limit_bytes=vmem_limit),
    )(patches, wko, b2d)

    # TODO(synk): output kept NCHW to match the PyTorch module, which costs one
    # XLA transpose; an NHWC consumer would avoid this HBM round trip.
    y = out[:M, :O].reshape(N, Hout * Wout, O)
    y = jnp.transpose(y, (0, 2, 1)).reshape(N, O, Hout, Wout)
    return y


def make_group_mask(in_channels, out_channels, in_groups, out_groups):
    """Replicates the U buffer construction from FGConv2d.__init__."""
    if in_groups is None or out_groups is None:
        return jnp.ones((out_channels, in_channels), jnp.float32)
    ig = np.cumsum([0] + list(in_groups))
    og = np.cumsum([0] + list(out_groups))
    U = np.zeros((out_channels, in_channels), dtype=np.float32)
    for i in range(1, len(ig)):
        U[og[i - 1]:og[i], ig[i - 1]:ig[i]] = 1.0
    return jnp.asarray(U)


if __name__ == "__main__":
    # Module config (small, consistent with FGConv2d(in, out, k, ...)).
    N, C, H, W = 2, 4, 16, 16
    O, KH, KW = 8, 3, 3
    stride, padding, dilation = (1, 1), (1, 1), (1, 1)
    in_groups, out_groups = [2, 2], [4, 4]

    key = jax.random.PRNGKey(0)
    kx, kw, kb = jax.random.split(key, 3)
    x = jax.random.normal(kx, (N, C, H, W), dtype=jnp.float32)
    fan_in = C * KH * KW
    bound = 1.0 / np.sqrt(fan_in)
    weight = jax.random.uniform(kw, (O, C, KH, KW), jnp.float32, -bound, bound)
    bias = jax.random.uniform(kb, (O,), jnp.float32, -bound, bound)
    U = make_group_mask(C, O, in_groups, out_groups)

    y = fgconv2d_pallas(x, weight, bias, U,
                        stride=stride, padding=padding, dilation=dilation)
    y = jax.block_until_ready(y)

    # Pure-JAX reference with the same bf16 operand precision (f32 accumulate),
    # matching the kernel's MXU dtype choice.
    masked_w = weight * U.reshape(O, C, 1, 1)
    ref = jax.lax.conv_general_dilated(
        x.astype(jnp.bfloat16), masked_w.astype(jnp.bfloat16),
        window_strides=stride,
        padding=((padding[0], padding[0]), (padding[1], padding[1])),
        rhs_dilation=dilation,
        dimension_numbers=("NCHW", "OIHW", "NCHW"),
        preferred_element_type=jnp.float32) + bias.reshape(1, O, 1, 1)
    np.testing.assert_allclose(np.asarray(y), np.asarray(ref),
                               rtol=1e-2, atol=1e-2)

    print("KERNEL_OK")
</pallas_src>

<mosaic_0001>
module attributes {stable_mosaic.version = 11 : i64} {
  func.func @_fgconv_matmul_kernel(%arg0: i32, %arg1: i32, %arg2: memref<512x36xbf16, #tpu.memory_space<vmem>>, %arg3: memref<36x128xbf16, #tpu.memory_space<vmem>>, %arg4: memref<1x128xf32, #tpu.memory_space<vmem>>, %arg5: memref<512x128xf32, #tpu.memory_space<vmem>>) attributes {dimension_semantics = [#tpu.dimension_semantics<parallel>, #tpu.dimension_semantics<parallel>], iteration_bounds = array<i64: 1, 1>, scalar_prefetch = 0 : i64, scratch_operands = 0 : i64, tpu.core_type = #tpu.core_type<tc>, window_params = [{transform_indices = @transform_0, window_bounds = array<i64: 512, 36>}, {transform_indices = @transform_1, window_bounds = array<i64: 36, 128>}, {transform_indices = @transform_2, window_bounds = array<i64: 1, 128>}, {transform_indices = @transform_3, window_bounds = array<i64: 512, 128>}]} {
    %c0 = arith.constant 0 : index
    %c0_0 = arith.constant 0 : index
    %0 = vector.load %arg2[%c0, %c0_0] : memref<512x36xbf16, #tpu.memory_space<vmem>>, vector<512x36xbf16>
    %c0_1 = arith.constant 0 : index
    %c0_2 = arith.constant 0 : index
    %1 = vector.load %arg3[%c0_1, %c0_2] : memref<36x128xbf16, #tpu.memory_space<vmem>>, vector<36x128xbf16>
    %cst = arith.constant dense<0.000000e+00> : vector<512x128xf32>
    %2 = tpu.matmul %0, %1, %cst {dimension_numbers = #tpu.dot_dimension_numbers<[1], [0], [0], [1], [0, 0, 1, 1], [], []>} : vector<512x36xbf16>, vector<36x128xbf16>, vector<512x128xf32> -> vector<512x128xf32>
    %c0_3 = arith.constant 0 : index
    %c0_4 = arith.constant 0 : index
    %3 = vector.load %arg4[%c0_3, %c0_4] : memref<1x128xf32, #tpu.memory_space<vmem>>, vector<1x128xf32>
    %4 = vector.broadcast %3 : vector<1x128xf32> to vector<512x128xf32>
    %5 = arith.addf %2, %4 : vector<512x128xf32>
    %c0_5 = arith.constant 0 : index
    %c0_6 = arith.constant 0 : index
    %6 = vector.load %arg5[%c0_5, %c0_6] : memref<512x128xf32, #tpu.memory_space<vmem>>, vector<512x128xf32>
    tpu.vector_store %arg5[%c0_5, %c0_6], %5 {strides = array<i32>} : memref<512x128xf32, #tpu.memory_space<vmem>>, vector<512x128xf32>,
    return
  }
  func.func @transform_0(%arg0: i32, %arg1: i32) -> (i32, i32) {
    %c0_i32 = arith.constant 0 : i32
    %c0_i32_0 = arith.constant 0 : i32
    return %arg0, %c0_i32 : i32, i32
  }
  func.func @transform_1(%arg0: i32, %arg1: i32) -> (i32, i32) {
    %c0_i32 = arith.constant 0 : i32
    %c0_i32_0 = arith.constant 0 : i32
    return %c0_i32, %arg1 : i32, i32
  }
  func.func @transform_2(%arg0: i32, %arg1: i32) -> (i32, i32) {
    %c0_i32 = arith.constant 0 : i32
    %c0_i32_0 = arith.constant 0 : i32
    return %c0_i32, %arg1 : i32, i32
  }
  func.func @transform_3(%arg0: i32, %arg1: i32) -> (i32, i32) {
    %c0_i32 = arith.constant 0 : i32
    return %arg0, %arg1 : i32, i32
  }
}

</mosaic_0001>

<llo_original>
// kernel: tpu_custom_call.1
$region0: #{tpu_custom_call.1}
  #allocation0 [shape = 'u32[]', space=smem, size = 0x4, offset = 0x4, fixed_abs, tag = 'smem constant byte address 0x4 - core index']
  #allocation1 [shape = 'u32[72,128]{1,0:T(1,128)}', space=vmem, size = 0x9000, scoped, tag = 'internal scratch']
  %s0 = inlined_call_operand.vmem [shape: bf16[512,36], index: 0, kind: input, shape index: {}]
  %s1 = inlined_call_operand.vmem [shape: bf16[36,128], index: 1, kind: input, shape index: {}]
  %s2 = inlined_call_operand.vmem [shape: f32[1,128], index: 2, kind: input, shape index: {}]
  %s3 = inlined_call_operand.hbm [shape: f32[512,128], index: 3, kind: output, shape index: {}]
  %s4 = sld [smem:[#allocation0]]
  $region22: #{tpu_custom_call.1} parent=0
    _
  %s6 = ssub.s32 1, %s4
  %s7 = scalar_select 0, %s6, %s4
  $region1: #{tpu_custom_call.1} parent=0
    #allocation2 [shape = 'u8[262144]{0}', space=vmem, size = 0x40000, scoped, tag = 'output window, operand 0, single buffered']
    #allocation3 [shape = 's32[1]{0}', space=sflag, size = 0x4, scoped, tag = 'scoped memory for tpu_custom_call.1']
    %8 = vsyncpa [#allocation3], 0
    // Predicated region
    $region2: #{tpu_custom_call.1} parent=1 // pred_check
      _
    $region3: #{tpu_custom_call.1} parent=1 // pred_check_branch
      %10 = sbr.rel (0) target = $region5
    $region4: #{tpu_custom_call.1} parent=1 // pred_region
      _
    $region5: #{tpu_custom_call.1} parent=1 // pred_fallthru
      _
    // Predicated region
    $region6: #{tpu_custom_call.1} parent=1 // pred_check
      _
    $region7: #{tpu_custom_call.1} parent=1 // pred_check_branch
      %12 = sbr.rel (0) target = $region9
    $region8: #{tpu_custom_call.1} parent=1 // pred_region
      _
    $region9: #{tpu_custom_call.1} parent=1 // pred_fallthru
      _
    // Predicated region
    $region10: #{tpu_custom_call.1} parent=1 // pred_check
      _
    $region11: #{tpu_custom_call.1} parent=1 // pred_check_branch
      %14 = sbr.rel (0) target = $region13
    $region12: #{tpu_custom_call.1} parent=1 // pred_region
      _
    $region13: #{tpu_custom_call.1} parent=1 // pred_fallthru
      _
    %v16 = vld [vmem:[%s0] sm:$0xf]
    %v17 = vld [vmem:[%s0 + $0x4] sm:$0xf]
    %v18 = vld [vmem:[%s0 + $0x8] sm:$0xf]
    %v19 = vld [vmem:[%s0 + $0xc] sm:$0xf]
    %v20 = vld [vmem:[%s0 + $0x10] sm:$0xf]
    %v21 = vld [vmem:[%s0 + $0x14] sm:$0xf]
    %v22 = vld [vmem:[%s0 + $0x18] sm:$0xf]
    %v23 = vld [vmem:[%s0 + $0x1c] sm:$0xf]
    %v24 = vld [vmem:[%s0 + $0x20] sm:$0xf]
    %v25 = vld [vmem:[%s0 + $0x24] sm:$0xf]
    %v26 = vld [vmem:[%s0 + $0x28] sm:$0xf]
    %v27 = vld [vmem:[%s0 + $0x2c] sm:$0xf]
    %v28 = vld [vmem:[%s0 + $0x30] sm:$0xf]
    %v29 = vld [vmem:[%s0 + $0x34] sm:$0xf]
    %v30 = vld [vmem:[%s0 + $0x38] sm:$0xf]
    %v31 = vld [vmem:[%s0 + $0x3c] sm:$0xf]
    %v32 = vld [vmem:[%s0 + $0x40] sm:$0xf]
    %v33 = vld [vmem:[%s0 + $0x44] sm:$0xf]
    %v34 = vld [vmem:[%s0 + $0x48] sm:$0xf]
    %v35 = vld [vmem:[%s0 + $0x4c] sm:$0xf]
    %v36 = vld [vmem:[%s0 + $0x50] sm:$0xf]
    %v37 = vld [vmem:[%s0 + $0x54] sm:$0xf]
    %v38 = vld [vmem:[%s0 + $0x58] sm:$0xf]
    %v39 = vld [vmem:[%s0 + $0x5c] sm:$0xf]
    %v40 = vld [vmem:[%s0 + $0x60] sm:$0xf]
    %v41 = vld [vmem:[%s0 + $0x64] sm:$0xf]
    %v42 = vld [vmem:[%s0 + $0x68] sm:$0xf]
    %v43 = vld [vmem:[%s0 + $0x6c] sm:$0xf]
    %v44 = vld [vmem:[%s0 + $0x70] sm:$0xf]
    %v45 = vld [vmem:[%s0 + $0x74] sm:$0xf]
    %v46 = vld [vmem:[%s0 + $0x78] sm:$0xf]
    %v47 = vld [vmem:[%s0 + $0x7c] sm:$0xf]
    %v48 = vld [vmem:[%s0 + $0x80] sm:$0xf]
    %v49 = vld [vmem:[%s0 + $0x84] sm:$0xf]
    %v50 = vld [vmem:[%s0 + $0x88] sm:$0xf]
    %v51 = vld [vmem:[%s0 + $0x8c] sm:$0xf]
    %v52 = vld [vmem:[%s0 + $0x90] sm:$0xf]
    %v53 = vld [vmem:[%s0 + $0x94] sm:$0xf]
    %v54 = vld [vmem:[%s0 + $0x98] sm:$0xf]
    %v55 = vld [vmem:[%s0 + $0x9c] sm:$0xf]
    %v56 = vld [vmem:[%s0 + $0xa0] sm:$0xf]
    %v57 = vld [vmem:[%s0 + $0xa4] sm:$0xf]
    %v58 = vld [vmem:[%s0 + $0xa8] sm:$0xf]
    %v59 = vld [vmem:[%s0 + $0xac] sm:$0xf]
    %v60 = vld [vmem:[%s0 + $0xb0] sm:$0xf]
    %v61 = vld [vmem:[%s0 + $0xb4] sm:$0xf]
    %v62 = vld [vmem:[%s0 + $0xb8] sm:$0xf]
    %v63 = vld [vmem:[%s0 + $0xbc] sm:$0xf]
    %v64 = vld [vmem:[%s0 + $0xc0] sm:$0xf]
    %v65 = vld [vmem:[%s0 + $0xc4] sm:$0xf]
    %v66 = vld [vmem:[%s0 + $0xc8] sm:$0xf]
    %v67 = vld [vmem:[%s0 + $0xcc] sm:$0xf]
    %v68 = vld [vmem:[%s0 + $0xd0] sm:$0xf]
    %v69 = vld [vmem:[%s0 + $0xd4] sm:$0xf]
    %v70 = vld [vmem:[%s0 + $0xd8] sm:$0xf]
    %v71 = vld [vmem:[%s0 + $0xdc] sm:$0xf]
    %v72 = vld [vmem:[%s0 + $0xe0] sm:$0xf]
    %v73 = vld [vmem:[%s0 + $0xe4] sm:$0xf]
    %v74 = vld [vmem:[%s0 + $0xe8] sm:$0xf]
    %v75 = vld [vmem:[%s0 + $0xec] sm:$0xf]
    %v76 = vld [vmem:[%s0 + $0xf0] sm:$0xf]
    %v77 = vld [vmem:[%s0 + $0xf4] sm:$0xf]
    %v78 = vld [vmem:[%s0 + $0xf8] sm:$0xf]
    %v79 = vld [vmem:[%s0 + $0xfc] sm:$0xf]
    %v80 = vld [vmem:[%s1] sm:$0xf]
    %v81 = vld [vmem:[%s1 + $0x4] sm:$0xf]
    %v82 = vld [vmem:[%s1 + $0x8] sm:$0xf]
    %v83 = vld [vmem:[%s1 + $0xc] sm:$0xf]
    %v84 = vld [vmem:[%s1 + $0x10] sm:$0x3]
    %v85 = vld [vmem:[%s2] sm:$0x1]
    %v87 = vperm.slane %v85, 0
    %v153 = vunpack.c.l.b16 %v16
    %v154 = vunpack.c.l.b16 %v17
    %v155 = vunpack.c.l.b16 %v18
    %v156 = vunpack.c.l.b16 %v19
    %v157 = vunpack.c.l.b16 %v20
    %v158 = vunpack.c.l.b16 %v21
    %v159 = vunpack.c.l.b16 %v22
    %v160 = vunpack.c.l.b16 %v23
    %v161 = vunpack.c.l.b16 %v24
    %v162 = vunpack.c.l.b16 %v25
    %v163 = vunpack.c.l.b16 %v26
    %v164 = vunpack.c.l.b16 %v27
    %v165 = vunpack.c.l.b16 %v28
    %v166 = vunpack.c.l.b16 %v29
    %v167 = vunpack.c.l.b16 %v30
    %v168 = vunpack.c.l.b16 %v31
    %v169 = vunpack.c.l.b16 %v32
    %v170 = vunpack.c.l.b16 %v33
    %v171 = vunpack.c.l.b16 %v34
    %v172 = vunpack.c.l.b16 %v35
    %v173 = vunpack.c.l.b16 %v36
    %v174 = vunpack.c.l.b16 %v37
    %v175 = vunpack.c.l.b16 %v38
    %v176 = vunpack.c.l.b16 %v39
    %v177 = vunpack.c.l.b16 %v40
    %v178 = vunpack.c.l.b16 %v41
    %v179 = vunpack.c.l.b16 %v42
    %v180 = vunpack.c.l.b16 %v43
    %v181 = vunpack.c.l.b16 %v44
    %v182 = vunpack.c.l.b16 %v45
    %v183 = vunpack.c.l.b16 %v46
    %v184 = vunpack.c.l.b16 %v47
    %v185 = vunpack.c.l.b16 %v48
    %v186 = vunpack.c.l.b16 %v49
    %v187 = vunpack.c.l.b16 %v50
    %v188 = vunpack.c.l.b16 %v51
    %v189 = vunpack.c.l.b16 %v52
    %v190 = vunpack.c.l.b16 %v53
    %v191 = vunpack.c.l.b16 %v54
    %v192 = vunpack.c.l.b16 %v55
    %v193 = vunpack.c.l.b16 %v56
    %v194 = vunpack.c.l.b16 %v57
    %v195 = vunpack.c.l.b16 %v58
    %v196 = vunpack.c.l.b16 %v59
    %v197 = vunpack.c.l.b16 %v60
    %v198 = vunpack.c.l.b16 %v61
    %v199 = vunpack.c.l.b16 %v62
    %v200 = vunpack.c.l.b16 %v63
    %v201 = vunpack.c.l.b16 %v64
    %v202 = vunpack.c.l.b16 %v65
    %v203 = vunpack.c.l.b16 %v66
    %v204 = vunpack.c.l.b16 %v67
    %v205 = vunpack.c.l.b16 %v68
    %v206 = vunpack.c.l.b16 %v69
    %v207 = vunpack.c.l.b16 %v70
    %v208 = vunpack.c.l.b16 %v71
    %v209 = vunpack.c.l.b16 %v72
    %v210 = vunpack.c.l.b16 %v73
    %v211 = vunpack.c.l.b16 %v74
    %v212 = vunpack.c.l.b16 %v75
    %v213 = vunpack.c.l.b16 %v76
    %v214 = vunpack.c.l.b16 %v77
    %v215 = vunpack.c.l.b16 %v78
    %v216 = vunpack.c.l.b16 %v79
    %v217 = vpack.c.b16 %v154, %v153
    %v218 = vpack.c.b16 %v156, %v155
    %v219 = vpack.c.b16 %v158, %v157
    %v220 = vpack.c.b16 %v160, %v159
    %v221 = vpack.c.b16 %v162, %v161
    %v222 = vpack.c.b16 %v164, %v163
    %v223 = vpack.c.b16 %v166, %v165
    %v224 = vpack.c.b16 %v168, %v167
    %v225 = vpack.c.b16 %v170, %v169
    %v226 = vpack.c.b16 %v172, %v171
    %v227 = vpack.c.b16 %v174, %v173
    %v228 = vpack.c.b16 %v176, %v175
    %v229 = vpack.c.b16 %v178, %v177
    %v230 = vpack.c.b16 %v180, %v179
    %v231 = vpack.c.b16 %v182, %v181
    %v232 = vpack.c.b16 %v184, %v183
    %v233 = vpack.c.b16 %v186, %v185
    %v234 = vpack.c.b16 %v188, %v187
    %v235 = vpack.c.b16 %v190, %v189
    %v236 = vpack.c.b16 %v192, %v191
    %v237 = vpack.c.b16 %v194, %v193
    %v238 = vpack.c.b16 %v196, %v195
    %v239 = vpack.c.b16 %v198, %v197
    %v240 = vpack.c.b16 %v200, %v199
    %v241 = vpack.c.b16 %v202, %v201
    %v242 = vpack.c.b16 %v204, %v203
    %v243 = vpack.c.b16 %v206, %v205
    %v244 = vpack.c.b16 %v208, %v207
    %v245 = vpack.c.b16 %v210, %v209
    %v246 = vpack.c.b16 %v212, %v211
    %v247 = vpack.c.b16 %v214, %v213
    %v248 = vpack.c.b16 %v216, %v215
    %v254 = vunpack.c.l.b16 %v80
    %v255 = vunpack.c.l.b16 %v81
    %v256 = vunpack.c.l.b16 %v82
    %v257 = vunpack.c.l.b16 %v83
    %v258 = vunpack.c.l.b16 %v84
    %v259 = vpack.c.b16 %v255, %v254
    %v260 = vpack.c.b16 %v257, %v256
    %v261 = vpack.c.b16 %v258, %v258
    %vm264 = vcmask 293888
    %v266 = vsel %vm264, %v217, 0
    %v269 = vsel %vm264, %v218, 0
    %v272 = vsel %vm264, %v219, 0
    %v275 = vsel %vm264, %v220, 0
    %v278 = vsel %vm264, %v221, 0
    %v281 = vsel %vm264, %v222, 0
    %v284 = vsel %vm264, %v223, 0
    %v287 = vsel %vm264, %v224, 0
    %v290 = vsel %vm264, %v225, 0
    %v293 = vsel %vm264, %v226, 0
    %v296 = vsel %vm264, %v227, 0
    %v299 = vsel %vm264, %v228, 0
    %v302 = vsel %vm264, %v229, 0
    %v305 = vsel %vm264, %v230, 0
    %v308 = vsel %vm264, %v231, 0
    %v311 = vsel %vm264, %v232, 0
    %v314 = vsel %vm264, %v233, 0
    %v317 = vsel %vm264, %v234, 0
    %v320 = vsel %vm264, %v235, 0
    %v323 = vsel %vm264, %v236, 0
    %v326 = vsel %vm264, %v237, 0
    %v329 = vsel %vm264, %v238, 0
    %v332 = vsel %vm264, %v239, 0
    %v335 = vsel %vm264, %v240, 0
    %v338 = vsel %vm264, %v241, 0
    %v341 = vsel %vm264, %v242, 0
    %v344 = vsel %vm264, %v243, 0
    %v347 = vsel %vm264, %v244, 0
    %v350 = vsel %vm264, %v245, 0
    %v353 = vsel %vm264, %v246, 0
    %v356 = vsel %vm264, %v247, 0
    %v359 = vsel %vm264, %v248, 0
    %vm361 = vcmask 1041408
    %v363 = vsel %vm361, %v261, 0
    %365 = vmatpush.bf16.msra.mxu0 0
    %366 = vmatpush.bf16.msra.mxu0 0
    %367 = vmatpush.bf16.msra.mxu0 0
    %368 = vmatpush.bf16.msra.mxu0 0
    %369 = vmatpush.bf16.msra.mxu0 0
    %370 = vmatpush.bf16.msra.mxu0 %v363
    %371 = vmatpush.bf16.msra.mxu0 %v260
    %372 = vmatpush.bf16.msra.mxu0 %v259
    %373 = vmatmul.bf16.gmra.mxu0 %v266
    %v374 = vpop.f32.mrf.mxu0
    %v375 = vadd.f32 %v87, %v374
    %v376 = vpop.f32.mrf.mxu0
    %v377 = vadd.f32 %v87, %v376
    %378 = vmatmul.bf16.gmra.mxu0 %v269
    %v379 = vpop.f32.mrf.mxu0
    %v380 = vadd.f32 %v87, %v379
    %v381 = vpop.f32.mrf.mxu0
    %v382 = vadd.f32 %v87, %v381
    %383 = vmatmul.bf16.gmra.mxu0 %v272
    %v384 = vpop.f32.mrf.mxu0
    %v385 = vadd.f32 %v87, %v384
    %v386 = vpop.f32.mrf.mxu0
    %v387 = vadd.f32 %v87, %v386
    %388 = vmatmul.bf16.gmra.mxu0 %v275
    %v389 = vpop.f32.mrf.mxu0
    %v390 = vadd.f32 %v87, %v389
    %v391 = vpop.f32.mrf.mxu0
    %v392 = vadd.f32 %v87, %v391
    %393 = vmatmul.bf16.gmra.mxu0 %v278
    %v394 = vpop.f32.mrf.mxu0
    %v395 = vadd.f32 %v87, %v394
    %v396 = vpop.f32.mrf.mxu0
    %v397 = vadd.f32 %v87, %v396
    %398 = vmatmul.bf16.gmra.mxu0 %v281
    %v399 = vpop.f32.mrf.mxu0
    %v400 = vadd.f32 %v87, %v399
    %v401 = vpop.f32.mrf.mxu0
    %v402 = vadd.f32 %v87, %v401
    %403 = vmatmul.bf16.gmra.mxu0 %v284
    %v404 = vpop.f32.mrf.mxu0
    %v405 = vadd.f32 %v87, %v404
    %v406 = vpop.f32.mrf.mxu0
    %v407 = vadd.f32 %v87, %v406
    %408 = vmatmul.bf16.gmra.mxu0 %v287
    %v409 = vpop.f32.mrf.mxu0
    %v410 = vadd.f32 %v87, %v409
    %v411 = vpop.f32.mrf.mxu0
    %v412 = vadd.f32 %v87, %v411
    %413 = vmatmul.bf16.gmra.mxu0 %v290
    %v414 = vpop.f32.mrf.mxu0
    %v415 = vadd.f32 %v87, %v414
    %v416 = vpop.f32.mrf.mxu0
    %v417 = vadd.f32 %v87, %v416
    %418 = vmatmul.bf16.gmra.mxu0 %v293
    %v419 = vpop.f32.mrf.mxu0
    %v420 = vadd.f32 %v87, %v419
    %v421 = vpop.f32.mrf.mxu0
    %v422 = vadd.f32 %v87, %v421
    %423 = vmatmul.bf16.gmra.mxu0 %v296
    %v424 = vpop.f32.mrf.mxu0
    %v425 = vadd.f32 %v87, %v424
    %v426 = vpop.f32.mrf.mxu0
    %v427 = vadd.f32 %v87, %v426
    %428 = vmatmul.bf16.gmra.mxu0 %v299
    %v429 = vpop.f32.mrf.mxu0
    %v430 = vadd.f32 %v87, %v429
    %v431 = vpop.f32.mrf.mxu0
    %v432 = vadd.f32 %v87, %v431
    %433 = vmatmul.bf16.gmra.mxu0 %v302
    %v434 = vpop.f32.mrf.mxu0
    %v435 = vadd.f32 %v87, %v434
    %v436 = vpop.f32.mrf.mxu0
    %v437 = vadd.f32 %v87, %v436
    %438 = vmatmul.bf16.gmra.mxu0 %v305
    %v439 = vpop.f32.mrf.mxu0
    %v440 = vadd.f32 %v87, %v439
    %v441 = vpop.f32.mrf.mxu0
    %v442 = vadd.f32 %v87, %v441
    %443 = vmatmul.bf16.gmra.mxu0 %v308
    %v444 = vpop.f32.mrf.mxu0
    %v445 = vadd.f32 %v87, %v444
    %v446 = vpop.f32.mrf.mxu0
    %v447 = vadd.f32 %v87, %v446
    %448 = vmatmul.bf16.gmra.mxu0 %v311
    %v449 = vpop.f32.mrf.mxu0
    %v450 = vadd.f32 %v87, %v449
    %v451 = vpop.f32.mrf.mxu0
    %v452 = vadd.f32 %v87, %v451
    %453 = vmatmul.bf16.gmra.mxu0 %v314
    %v454 = vpop.f32.mrf.mxu0
    %v455 = vadd.f32 %v87, %v454
    %v456 = vpop.f32.mrf.mxu0
    %v457 = vadd.f32 %v87, %v456
    %458 = vmatmul.bf16.gmra.mxu0 %v317
    %v459 = vpop.f32.mrf.mxu0
    %v460 = vadd.f32 %v87, %v459
    %v461 = vpop.f32.mrf.mxu0
    %v462 = vadd.f32 %v87, %v461
    %463 = vmatmul.bf16.gmra.mxu0 %v320
    %v464 = vpop.f32.mrf.mxu0
    %v465 = vadd.f32 %v87, %v464
    %v466 = vpop.f32.mrf.mxu0
    %v467 = vadd.f32 %v87, %v466
    %468 = vmatmul.bf16.gmra.mxu0 %v323
    %v469 = vpop.f32.mrf.mxu0
    %v470 = vadd.f32 %v87, %v469
    %v471 = vpop.f32.mrf.mxu0
    %v472 = vadd.f32 %v87, %v471
    %473 = vmatmul.bf16.gmra.mxu0 %v326
    %v474 = vpop.f32.mrf.mxu0
    %v475 = vadd.f32 %v87, %v474
    %v476 = vpop.f32.mrf.mxu0
    %v477 = vadd.f32 %v87, %v476
    %478 = vmatmul.bf16.gmra.mxu0 %v329
    %v479 = vpop.f32.mrf.mxu0
    %v480 = vadd.f32 %v87, %v479
    %v481 = vpop.f32.mrf.mxu0
    %v482 = vadd.f32 %v87, %v481
    %483 = vmatmul.bf16.gmra.mxu0 %v332
    %v484 = vpop.f32.mrf.mxu0
    %v485 = vadd.f32 %v87, %v484
    %v486 = vpop.f32.mrf.mxu0
    %v487 = vadd.f32 %v87, %v486
    %488 = vmatmul.bf16.gmra.mxu0 %v335
    %v489 = vpop.f32.mrf.mxu0
    %v490 = vadd.f32 %v87, %v489
    %v491 = vpop.f32.mrf.mxu0
    %v492 = vadd.f32 %v87, %v491
    %493 = vmatmul.bf16.gmra.mxu0 %v338
    %v494 = vpop.f32.mrf.mxu0
    %v495 = vadd.f32 %v87, %v494
    %v496 = vpop.f32.mrf.mxu0
    %v497 = vadd.f32 %v87, %v496
    %498 = vmatmul.bf16.gmra.mxu0 %v341
    %v499 = vpop.f32.mrf.mxu0
    %v500 = vadd.f32 %v87, %v499
    %v501 = vpop.f32.mrf.mxu0
    %v502 = vadd.f32 %v87, %v501
    %503 = vmatmul.bf16.gmra.mxu0 %v344
    %v504 = vpop.f32.mrf.mxu0
    %v505 = vadd.f32 %v87, %v504
    %v506 = vpop.f32.mrf.mxu0
    %v507 = vadd.f32 %v87, %v506
    %508 = vmatmul.bf16.gmra.mxu0 %v347
    %v509 = vpop.f32.mrf.mxu0
    %v510 = vadd.f32 %v87, %v509
    %v511 = vpop.f32.mrf.mxu0
    %v512 = vadd.f32 %v87, %v511
    %513 = vmatmul.bf16.gmra.mxu0 %v350
    %v514 = vpop.f32.mrf.mxu0
    %v515 = vadd.f32 %v87, %v514
    %v516 = vpop.f32.mrf.mxu0
    %v517 = vadd.f32 %v87, %v516
    %518 = vmatmul.bf16.gmra.mxu0 %v353
    %v519 = vpop.f32.mrf.mxu0
    %v520 = vadd.f32 %v87, %v519
    %v521 = vpop.f32.mrf.mxu0
    %v522 = vadd.f32 %v87, %v521
    %523 = vmatmul.bf16.gmra.mxu0 %v356
    %v524 = vpop.f32.mrf.mxu0
    %v525 = vadd.f32 %v87, %v524
    %v526 = vpop.f32.mrf.mxu0
    %v527 = vadd.f32 %v87, %v526
    %528 = vmatmul.bf16.gmra.mxu0 %v359
    %v529 = vpop.f32.mrf.mxu0
    %v530 = vadd.f32 %v87, %v529
    %v531 = vpop.f32.mrf.mxu0
    %v532 = vadd.f32 %v87, %v531
    %533 = vdwg.mxu0
    %534 = vst [vmem:[#allocation2] sm:$0xff] %v375
    %535 = vst [vmem:[#allocation2 + $0x8] sm:$0xff] %v377
    %536 = vst [vmem:[#allocation2 + $0x10] sm:$0xff] %v380
    %537 = vst [vmem:[#allocation2 + $0x18] sm:$0xff] %v382
    %538 = vst [vmem:[#allocation2 + $0x20] sm:$0xff] %v385
    %539 = vst [vmem:[#allocation2 + $0x28] sm:$0xff] %v387
    %540 = vst [vmem:[#allocation2 + $0x30] sm:$0xff] %v390
    %541 = vst [vmem:[#allocation2 + $0x38] sm:$0xff] %v392
    %542 = vst [vmem:[#allocation2 + $0x40] sm:$0xff] %v395
    %543 = vst [vmem:[#allocation2 + $0x48] sm:$0xff] %v397
    %544 = vst [vmem:[#allocation2 + $0x50] sm:$0xff] %v400
    %545 = vst [vmem:[#allocation2 + $0x58] sm:$0xff] %v402
    %546 = vst [vmem:[#allocation2 + $0x60] sm:$0xff] %v405
    %547 = vst [vmem:[#allocation2 + $0x68] sm:$0xff] %v407
    %548 = vst [vmem:[#allocation2 + $0x70] sm:$0xff] %v410
    %549 = vst [vmem:[#allocation2 + $0x78] sm:$0xff] %v412
    %550 = vst [vmem:[#allocation2 + $0x80] sm:$0xff] %v415
    %551 = vst [vmem:[#allocation2 + $0x88] sm:$0xff] %v417
    %552 = vst [vmem:[#allocation2 + $0x90] sm:$0xff] %v420
    %553 = vst [vmem:[#allocation2 + $0x98] sm:$0xff] %v422
    %554 = vst [vmem:[#allocation2 + $0xa0] sm:$0xff] %v425
    %555 = vst [vmem:[#allocation2 + $0xa8] sm:$0xff] %v427
    %556 = vst [vmem:[#allocation2 + $0xb0] sm:$0xff] %v430
    %557 = vst [vmem:[#allocation2 + $0xb8] sm:$0xff] %v432
    %558 = vst [vmem:[#allocation2 + $0xc0] sm:$0xff] %v435
    %559 = vst [vmem:[#allocation2 + $0xc8] sm:$0xff] %v437
    %560 = vst [vmem:[#allocation2 + $0xd0] sm:$0xff] %v440
    %561 = vst [vmem:[#allocation2 + $0xd8] sm:$0xff] %v442
    %562 = vst [vmem:[#allocation2 + $0xe0] sm:$0xff] %v445
    %563 = vst [vmem:[#allocation2 + $0xe8] sm:$0xff] %v447
    %564 = vst [vmem:[#allocation2 + $0xf0] sm:$0xff] %v450
    %565 = vst [vmem:[#allocation2 + $0xf8] sm:$0xff] %v452
    %566 = vst [vmem:[#allocation2 + $0x100] sm:$0xff] %v455
    %567 = vst [vmem:[#allocation2 + $0x108] sm:$0xff] %v457
    %568 = vst [vmem:[#allocation2 + $0x110] sm:$0xff] %v460
    %569 = vst [vmem:[#allocation2 + $0x118] sm:$0xff] %v462
    %570 = vst [vmem:[#allocation2 + $0x120] sm:$0xff] %v465
    %571 = vst [vmem:[#allocation2 + $0x128] sm:$0xff] %v467
    %572 = vst [vmem:[#allocation2 + $0x130] sm:$0xff] %v470
    %573 = vst [vmem:[#allocation2 + $0x138] sm:$0xff] %v472
    %574 = vst [vmem:[#allocation2 + $0x140] sm:$0xff] %v475
    %575 = vst [vmem:[#allocation2 + $0x148] sm:$0xff] %v477
    %576 = vst [vmem:[#allocation2 + $0x150] sm:$0xff] %v480
    %577 = vst [vmem:[#allocation2 + $0x158] sm:$0xff] %v482
    %578 = vst [vmem:[#allocation2 + $0x160] sm:$0xff] %v485
    %579 = vst [vmem:[#allocation2 + $0x168] sm:$0xff] %v487
    %580 = vst [vmem:[#allocation2 + $0x170] sm:$0xff] %v490
    %581 = vst [vmem:[#allocation2 + $0x178] sm:$0xff] %v492
    %582 = vst [vmem:[#allocation2 + $0x180] sm:$0xff] %v495
    %583 = vst [vmem:[#allocation2 + $0x188] sm:$0xff] %v497
    %584 = vst [vmem:[#allocation2 + $0x190] sm:$0xff] %v500
    %585 = vst [vmem:[#allocation2 + $0x198] sm:$0xff] %v502
    %586 = vst [vmem:[#allocation2 + $0x1a0] sm:$0xff] %v505
    %587 = vst [vmem:[#allocation2 + $0x1a8] sm:$0xff] %v507
    %588 = vst [vmem:[#allocation2 + $0x1b0] sm:$0xff] %v510
    %589 = vst [vmem:[#allocation2 + $0x1b8] sm:$0xff] %v512
    %590 = vst [vmem:[#allocation2 + $0x1c0] sm:$0xff] %v515
    %591 = vst [vmem:[#allocation2 + $0x1c8] sm:$0xff] %v517
    %592 = vst [vmem:[#allocation2 + $0x1d0] sm:$0xff] %v520
    %593 = vst [vmem:[#allocation2 + $0x1d8] sm:$0xff] %v522
    %594 = vst [vmem:[#allocation2 + $0x1e0] sm:$0xff] %v525
    %595 = vst [vmem:[#allocation2 + $0x1e8] sm:$0xff] %v527
    %596 = vst [vmem:[#allocation2 + $0x1f0] sm:$0xff] %v530
    %597 = vst [vmem:[#allocation2 + $0x1f8] sm:$0xff] %v532
    // Predicated region
    $region14: #{tpu_custom_call.1} parent=1 // pred_check
      _
    $region15: #{tpu_custom_call.1} parent=1 // pred_check_branch
      %599 = sbr.rel (0) target = $region17
    $region16: #{tpu_custom_call.1} parent=1 // pred_region
      %601 = vsyncadd [#allocation3], 0
      %s602 = sshll.u32 [#allocation2], 4
      %s603 = int_to_ptr.vmem [resolvable:$true] %s602
      %s604 = sshll.u32 %s3, 4
      %s605 = int_to_ptr.hbm [resolvable:$true] %s604
      %610 = dma.vmem_to_hbm [thread:$0]  %s603, 8192, %s605, [#allocation3], 128, 128, 8
    $region17: #{tpu_custom_call.1} parent=1 // pred_fallthru
      _
    // Predicated region
    $region18: #{tpu_custom_call.1} parent=1 // pred_check
      _
    $region19: #{tpu_custom_call.1} parent=1 // pred_check_branch
      %612 = sbr.rel (0) target = $region21
    $region20: #{tpu_custom_call.1} parent=1 // pred_region
      %614 = dma.done [#allocation3], 8192
    $region21: #{tpu_custom_call.1} parent=1 // pred_fallthru
      _
    %615 = vsyncpa [#allocation3], 1

</llo_original>
